<compile_context>
chip_gen: v7x
topology: tpu7x:2x2x1
jax: 0.10.0
libtpu: 0.0.40
codegen_flags: <defaults>
</compile_context>

<pallas_src>
import functools
import math

import jax
import jax.numpy as jnp
from jax import lax
from jax.experimental import pallas as pl
from jax.experimental.pallas import tpu as pltpu


# ---------------------------------------------------------------------------
# Pallas kernel: full FISTA iteration loop on VMEM-resident tiles.
# ---------------------------------------------------------------------------
def _dea1d_kernel(x_ref, a_ref, atl_ref, z_ref, code_ref, *,
                  T, thr, mu, twosided, dist, unroll):
    x = x_ref[...]          # (TN, D_in_p)   f32
    A = a_ref[...]          # (CD_p, D_in_p) matmul dtype (bf16 by default)
    ATL = atl_ref[...]      # (D_in_p, CD_p) matmul dtype, equals (A/L).T
    op_dtype = A.dtype
    TN = x.shape[0]
    CDp = A.shape[0]

    def conv_t(code):       # conv_transpose1d: (TN, CD_p) -> (TN, D_in_p)
        return jnp.dot(code.astype(op_dtype), A,
                       preferred_element_type=jnp.float32)

    def conv_over_L(sig):   # conv1d then *(1/L): (TN, D_in_p) -> (TN, CD_p)
        return jnp.dot(sig.astype(op_dtype), ATL,
                       preferred_element_type=jnp.float32)

    def shrink(v):
        if twosided:
            # relu(|v| - thr) * sign(v)  ==  v - clip(v, -thr, thr)
            return v - jnp.clip(v, -thr, thr)
        return jnp.maximum(v - thr, 0.0)

    # For the gaussian (linear) model mu can be folded into x once.
    if dist == 'gaussian':
        xb = x - mu if mu != 0.0 else x
    else:
        xb = x

    def residual(h_lin):
        # h_lin = conv_transpose(yk) (no +mu); returns x_tilda.
        if dist == 'gaussian':
            return xb - h_lin
        h = h_lin + mu if mu != 0.0 else h_lin
        if dist == 'binomial':
            return xb - jax.nn.sigmoid(h)
        return xb - jnp.exp(h)          # 'poisson'

    def fista_step(yk):
        return shrink(yk + conv_over_L(residual(conv_t(yk))))

    if T == 0:
        code_ref[...] = jnp.zeros((TN, CDp), jnp.float32)
        z_ref[...] = jnp.full((TN, x.shape[1]), mu, jnp.float32)
        return

    # --- iteration 0 (peeled): yk = x_old = 0, so conv_t(yk) = 0 and the
    # momentum coefficient (t_old-1)/t_new = 0  ->  yk_1 = x_1.
    if dist == 'gaussian':
        r0 = xb
    elif dist == 'binomial':
        r0 = xb - (1.0 / (1.0 + math.exp(-mu)))
    else:                               # 'poisson'
        r0 = xb - math.exp(mu)
    x1 = shrink(conv_over_L(r0))

    if unroll:
        # Momentum coefficients are static -> constant-fold and unroll.
        mom = []
        t_old = 1.0
        for _ in range(T):
            t_new = (1.0 + math.sqrt(1.0 + 4.0 * t_old * t_old)) / 2.0
            mom.append((t_old - 1.0) / t_new)
            t_old = t_new
        x_old, yk = x1, x1
        for t in range(1, T):
            x_new = fista_step(yk)
            yk = x_new + mom[t] * (x_new - x_old)
            x_old = x_new
        x_fin = x_old
    else:
        t1 = (1.0 + math.sqrt(5.0)) / 2.0   # t after iteration 0

        def body(_, carry):
            x_old, yk, t_old = carry
            x_new = fista_step(yk)
            t_new = (1.0 + jnp.sqrt(1.0 + 4.0 * t_old * t_old)) * 0.5
            yk_new = x_new + (t_old - 1.0) / t_new * (x_new - x_old)
            return (x_new, yk_new, t_new)

        x_fin, _, _ = lax.fori_loop(1, T, body, (x1, x1, jnp.float32(t1)))

    code_ref[...] = x_fin
    z_fin = conv_t(x_fin)
    z_ref[...] = z_fin + mu if mu != 0.0 else z_fin


# ---------------------------------------------------------------------------
# Glue: build the banded dictionary matrix A from H (parameter setup).
# ---------------------------------------------------------------------------
def build_operator(H, D_in, stride):
    C, _, K = H.shape
    D_enc = (D_in - K) // stride + 1
    i = jnp.arange(D_in)[None, :]          # (1, D_in)
    j = jnp.arange(D_enc)[:, None]         # (D_enc, 1)
    k = i - j * stride                     # (D_enc, D_in)
    valid = (k >= 0) & (k < K)
    kk = jnp.clip(k, 0, K - 1)
    Hm = H[:, 0, :]                        # (C, K)
    A = Hm[:, kk] * valid[None, :, :].astype(H.dtype)   # (C, D_enc, D_in)
    return A.reshape(C * D_enc, D_in)


def _round_up(a, b):
    return (a + b - 1) // b * b


def dea1d_forward(x, H, hyp, mu=0.0, matmul_dtype=jnp.bfloat16):
    """Pallas implementation of DEA1D.forward. Returns (z, x_new, lam)."""
    N, _, D_in = x.shape
    C, _, K = H.shape
    stride = int(hyp['stride'])
    L = float(hyp['L'])
    T = int(hyp['num_iters'])
    D_enc = (D_in - K) // stride + 1
    CD = C * D_enc
    lam = float(hyp['sigma']) * math.sqrt(2.0 * math.log(C * D_enc))
    mu = float(mu)

    # Lane-dense / MXU-aligned padded shapes.
    D_in_p = _round_up(max(D_in, 128), 128)
    CD_p = _round_up(max(CD, 128), 128)
    TILE_N = 256 if N >= 256 else _round_up(N, 8)
    N_p = _round_up(N, TILE_N)
    n_tiles = N_p // TILE_N

    # Dense banded operator, padded with zeros; pre-transposed / 1/L-prefolded
    # copy for the conv direction (MXU operands in bf16 by default, f32 acc).
    A = build_operator(H, D_in, stride).astype(jnp.float32)
    A_pad = jnp.zeros((CD_p, D_in_p), jnp.float32).at[:CD, :D_in].set(A)
    A_op = A_pad.astype(matmul_dtype)
    ATL_op = (A_pad * (1.0 / L)).T.astype(matmul_dtype)     # (D_in_p, CD_p)

    x_pad = jnp.zeros((N_p, D_in_p), jnp.float32).at[:N, :D_in].set(
        x[:, 0, :].astype(jnp.float32))

    # Explicit VMEM budget (resident A/ATL + double-buffered tiles + carries).
    itemsize = jnp.dtype(matmul_dtype).itemsize
    vmem_need = (
        2 * CD_p * D_in_p * itemsize            # A + (A/L).T, resident
        + 2 * 2 * TILE_N * D_in_p * 4           # x, z tiles (f32), double-buffered
        + 2 * TILE_N * CD_p * 4                 # code tile (f32), double-buffered
        + 6 * TILE_N * CD_p * 4                 # loop carries / temporaries
        + 2 * TILE_N * D_in_p * 4
    )
    vmem_limit = int(min(max(vmem_need * 3 // 2 + (4 << 20), 32 << 20),
                         56 << 20))             # stay under v7x's 64 MiB/TC

    kernel = functools.partial(
        _dea1d_kernel,
        T=T,
        thr=lam / L,
        mu=mu,
        twosided=bool(hyp['twosided']),
        dist=hyp['model_distribution'],
        unroll=(T <= 32),
    )

    z_pad, code_pad = pl.pallas_call(
        kernel,
        grid=(n_tiles,),
        in_specs=[
            pl.BlockSpec((TILE_N, D_in_p), lambda i: (i, 0)),   # x tile
            pl.BlockSpec((CD_p, D_in_p), lambda i: (0, 0)),     # A   (resident)
            pl.BlockSpec((D_in_p, CD_p), lambda i: (0, 0)),     # (A/L).T (resident)
        ],
        out_specs=(
            pl.BlockSpec((TILE_N, D_in_p), lambda i: (i, 0)),   # z tile
            pl.BlockSpec((TILE_N, CD_p), lambda i: (i, 0)),     # code tile
        ),
        out_shape=(jax.ShapeDtypeStruct((N_p, D_in_p), jnp.float32),
                   jax.ShapeDtypeStruct((N_p, CD_p), jnp.float32)),
        compiler_params=pltpu.CompilerParams(
            dimension_semantics=("parallel",),
            vmem_limit_bytes=vmem_limit),
    )(x_pad, A_op, ATL_op)

    z = z_pad[:N, :D_in].reshape(N, 1, D_in)
    x_new = code_pad[:N, :CD].reshape(N, C, D_enc)
    return z, x_new, jnp.array([lam], dtype=jnp.float32)


# ---------------------------------------------------------------------------
# Pure-JAX reference (true strided conv formulation, all f32) for checking.
# ---------------------------------------------------------------------------
def ref_forward(x, H, hyp, mu=0.0):
    N, _, D_in = x.shape
    C, _, K = H.shape
    stride = int(hyp['stride'])
    D_enc = (D_in - K) // stride + 1
    L = float(hyp['L'])
    T = int(hyp['num_iters'])
    lam = float(hyp['sigma']) * math.sqrt(2.0 * math.log(C * D_enc))
    Hm = H[:, 0, :]
    end = stride * (D_enc - 1) + 1

    def conv(sig):                # (N, D_in) -> (N, C, D_enc)
        cols = jnp.stack([sig[:, k:k + end:stride] for k in range(K)], axis=-1)
        return jnp.einsum('njk,ck->ncj', cols, Hm)

    def conv_t(code):             # (N, C, D_enc) -> (N, D_in)
        out = jnp.zeros((code.shape[0], D_in), jnp.float32)
        for k in range(K):
            out = out.at[:, k:k + end:stride].add(
                jnp.einsum('ncj,c->nj', code, Hm[:, k]))
        return out

    xs = x[:, 0, :]
    x_old = jnp.zeros((N, C, D_enc), jnp.float32)
    yk = x_old
    x_new = x_old
    t_old = 1.0
    for _ in range(T):
        h = conv_t(yk) + mu
        if hyp['model_distribution'] == 'gaussian':
            x_tilda = xs - h
        elif hyp['model_distribution'] == 'binomial':
            x_tilda = xs - jax.nn.sigmoid(h)
        else:
            x_tilda = xs - jnp.exp(h)
        x_new = yk + conv(x_tilda) / L
        if hyp['twosided']:
            x_new = jnp.maximum(jnp.abs(x_new) - lam / L, 0.0) * jnp.sign(x_new)
        else:
            x_new = jnp.maximum(x_new - lam / L, 0.0)
        t_new = (1.0 + math.sqrt(1.0 + 4.0 * t_old * t_old)) / 2.0
        yk = x_new + (t_old - 1.0) / t_new * (x_new - x_old)
        x_old = x_new
        t_old = t_new
    z = (conv_t(x_new) + mu).reshape(N, 1, D_in)
    return z, x_new


if __name__ == "__main__":
    hyp = dict(
        num_iters=5,
        L=10.0,
        num_conv=4,
        dictionary_dim=4,
        device=None,
        sigma=0.1,
        stride=2,
        twosided=True,
        model_distribution='gaussian',
    )
    N, D_in = 2, 16    # (D_in - K) divisible by stride, as the module assumes
    D_enc = (D_in - hyp['dictionary_dim']) // hyp['stride'] + 1

    key = jax.random.PRNGKey(0)
    k_h, k_x = jax.random.split(key)
    H = jax.random.normal(k_h, (hyp['num_conv'], 1, hyp['dictionary_dim']),
                          jnp.float32)
    H = H / jnp.linalg.norm(H, axis=-1, keepdims=True)   # F.normalize(dim=-1)
    x = jax.random.normal(k_x, (N, 1, D_in), jnp.float32)

    # f32-operand kernel run: tight check of the banded-A / FISTA semantics.
    z32, c32, lam = dea1d_forward(x, H, hyp, mu=0.0, matmul_dtype=jnp.float32)
    # Default bf16-MXU-operand run (production path).
    zbf, cbf, _ = dea1d_forward(x, H, hyp, mu=0.0)
    jax.block_until_ready((z32, c32, zbf, cbf, lam))

    z_ref, c_ref = ref_forward(x, H, hyp, mu=0.0)

    assert zbf.shape == (N, 1, D_in)
    assert cbf.shape == (N, hyp['num_conv'], D_enc)
    assert jnp.allclose(z32, z_ref, atol=1e-4, rtol=1e-4)
    assert jnp.allclose(c32, c_ref, atol=1e-4, rtol=1e-4)
    # bf16 MXU operands with f32 accumulation / f32 carries: looser tolerance.
    assert jnp.allclose(zbf, z_ref, atol=5e-2, rtol=5e-2)
    assert jnp.allclose(cbf, c_ref, atol=5e-2, rtol=5e-2)

    # Also exercise a nonlinear observation model path (poisson, one-sided).
    hyp_p = dict(hyp, model_distribution='poisson', twosided=False)
    zp, cp, _ = dea1d_forward(x, H, hyp_p, mu=0.0, matmul_dtype=jnp.float32)
    zp_ref, cp_ref = ref_forward(x, H, hyp_p, mu=0.0)
    jax.block_until_ready((zp, cp))
    assert jnp.allclose(zp, zp_ref, atol=1e-4, rtol=1e-4)
    assert jnp.allclose(cp, cp_ref, atol=1e-4, rtol=1e-4)

    print("KERNEL_OK")
</pallas_src>

<mosaic_0001>
module attributes {stable_mosaic.version = 11 : i64} {
  func.func @_dea1d_kernel(%arg0: i32, %arg1: memref<8x128xf32, #tpu.memory_space<vmem>>, %arg2: memref<128x128xf32, #tpu.memory_space<vmem>>, %arg3: memref<128x128xf32, #tpu.memory_space<vmem>>, %arg4: memref<8x128xf32, #tpu.memory_space<vmem>>, %arg5: memref<8x128xf32, #tpu.memory_space<vmem>>) attributes {dimension_semantics = [#tpu.dimension_semantics<parallel>], iteration_bounds = array<i64: 1>, scalar_prefetch = 0 : i64, scratch_operands = 0 : i64, tpu.core_type = #tpu.core_type<tc>, window_params = [{transform_indices = @transform_0, window_bounds = array<i64: 8, 128>}, {pipeline_mode = #tpu.pipeline_mode<synchronous>, transform_indices = @transform_1, window_bounds = array<i64: 128, 128>}, {pipeline_mode = #tpu.pipeline_mode<synchronous>, transform_indices = @transform_2, window_bounds = array<i64: 128, 128>}, {transform_indices = @transform_3, window_bounds = array<i64: 8, 128>}, {transform_indices = @transform_4, window_bounds = array<i64: 8, 128>}]} {
    %c0 = arith.constant 0 : index
    %c0_0 = arith.constant 0 : index
    %0 = vector.load %arg1[%c0, %c0_0] : memref<8x128xf32, #tpu.memory_space<vmem>>, vector<8x128xf32>
    %c0_1 = arith.constant 0 : index
    %c0_2 = arith.constant 0 : index
    %1 = vector.load %arg2[%c0_1, %c0_2] : memref<128x128xf32, #tpu.memory_space<vmem>>, vector<128x128xf32>
    %c0_3 = arith.constant 0 : index
    %c0_4 = arith.constant 0 : index
    %2 = vector.load %arg3[%c0_3, %c0_4] : memref<128x128xf32, #tpu.memory_space<vmem>>, vector<128x128xf32>
    %cst = arith.constant dense<0.000000e+00> : vector<8x128xf32>
    %3 = tpu.matmul %0, %2, %cst {dimension_numbers = #tpu.dot_dimension_numbers<[1], [0], [0], [1], [0, 0, 1, 1], [], []>} : vector<8x128xf32>, vector<128x128xf32>, vector<8x128xf32> -> vector<8x128xf32>
    %cst_5 = arith.constant -0.0258155167 : f32
    %cst_6 = arith.constant 0.0258155167 : f32
    %4 = vector.broadcast %cst_5 : f32 to vector<8x128xf32>
    %5 = arith.maximumf %4, %3 : vector<8x128xf32>
    %6 = vector.broadcast %cst_6 : f32 to vector<8x128xf32>
    %7 = arith.minimumf %6, %5 : vector<8x128xf32>
    %8 = arith.subf %3, %7 : vector<8x128xf32>
    %cst_7 = arith.constant dense<0.000000e+00> : vector<8x128xf32>
    %9 = tpu.matmul %8, %1, %cst_7 {dimension_numbers = #tpu.dot_dimension_numbers<[1], [0], [0], [1], [0, 0, 1, 1], [], []>} : vector<8x128xf32>, vector<128x128xf32>, vector<8x128xf32> -> vector<8x128xf32>
    %10 = arith.subf %0, %9 : vector<8x128xf32>
    %cst_8 = arith.constant dense<0.000000e+00> : vector<8x128xf32>
    %11 = tpu.matmul %10, %2, %cst_8 {dimension_numbers = #tpu.dot_dimension_numbers<[1], [0], [0], [1], [0, 0, 1, 1], [], []>} : vector<8x128xf32>, vector<128x128xf32>, vector<8x128xf32> -> vector<8x128xf32>
    %12 = arith.addf %8, %11 : vector<8x128xf32>
    %cst_9 = arith.constant -0.0258155167 : f32
    %cst_10 = arith.constant 0.0258155167 : f32
    %13 = vector.broadcast %cst_9 : f32 to vector<8x128xf32>
    %14 = arith.maximumf %13, %12 : vector<8x128xf32>
    %15 = vector.broadcast %cst_10 : f32 to vector<8x128xf32>
    %16 = arith.minimumf %15, %14 : vector<8x128xf32>
    %17 = arith.subf %12, %16 : vector<8x128xf32>
    %18 = arith.subf %17, %8 : vector<8x128xf32>
    %cst_11 = arith.constant 0.28175351 : f32
    %19 = vector.broadcast %cst_11 : f32 to vector<8x128xf32>
    %20 = arith.mulf %19, %18 : vector<8x128xf32>
    %21 = arith.addf %17, %20 : vector<8x128xf32>
    %cst_12 = arith.constant dense<0.000000e+00> : vector<8x128xf32>
    %22 = tpu.matmul %21, %1, %cst_12 {dimension_numbers = #tpu.dot_dimension_numbers<[1], [0], [0], [1], [0, 0, 1, 1], [], []>} : vector<8x128xf32>, vector<128x128xf32>, vector<8x128xf32> -> vector<8x128xf32>
    %23 = arith.subf %0, %22 : vector<8x128xf32>
    %cst_13 = arith.constant dense<0.000000e+00> : vector<8x128xf32>
    %24 = tpu.matmul %23, %2, %cst_13 {dimension_numbers = #tpu.dot_dimension_numbers<[1], [0], [0], [1], [0, 0, 1, 1], [], []>} : vector<8x128xf32>, vector<128x128xf32>, vector<8x128xf32> -> vector<8x128xf32>
    %25 = arith.addf %21, %24 : vector<8x128xf32>
    %cst_14 = arith.constant -0.0258155167 : f32
    %cst_15 = arith.constant 0.0258155167 : f32
    %26 = vector.broadcast %cst_14 : f32 to vector<8x128xf32>
    %27 = arith.maximumf %26, %25 : vector<8x128xf32>
    %28 = vector.broadcast %cst_15 : f32 to vector<8x128xf32>
    %29 = arith.minimumf %28, %27 : vector<8x128xf32>
    %30 = arith.subf %25, %29 : vector<8x128xf32>
    %31 = arith.subf %30, %17 : vector<8x128xf32>
    %cst_16 = arith.constant 0.434042782 : f32
    %32 = vector.broadcast %cst_16 : f32 to vector<8x128xf32>
    %33 = arith.mulf %32, %31 : vector<8x128xf32>
    %34 = arith.addf %30, %33 : vector<8x128xf32>
    %cst_17 = arith.constant dense<0.000000e+00> : vector<8x128xf32>
    %35 = tpu.matmul %34, %1, %cst_17 {dimension_numbers = #tpu.dot_dimension_numbers<[1], [0], [0], [1], [0, 0, 1, 1], [], []>} : vector<8x128xf32>, vector<128x128xf32>, vector<8x128xf32> -> vector<8x128xf32>
    %36 = arith.subf %0, %35 : vector<8x128xf32>
    %cst_18 = arith.constant dense<0.000000e+00> : vector<8x128xf32>
    %37 = tpu.matmul %36, %2, %cst_18 {dimension_numbers = #tpu.dot_dimension_numbers<[1], [0], [0], [1], [0, 0, 1, 1], [], []>} : vector<8x128xf32>, vector<128x128xf32>, vector<8x128xf32> -> vector<8x128xf32>
    %38 = arith.addf %34, %37 : vector<8x128xf32>
    %cst_19 = arith.constant -0.0258155167 : f32
    %cst_20 = arith.constant 0.0258155167 : f32
    %39 = vector.broadcast %cst_19 : f32 to vector<8x128xf32>
    %40 = arith.maximumf %39, %38 : vector<8x128xf32>
    %41 = vector.broadcast %cst_20 : f32 to vector<8x128xf32>
    %42 = arith.minimumf %41, %40 : vector<8x128xf32>
    %43 = arith.subf %38, %42 : vector<8x128xf32>
    %44 = arith.subf %43, %30 : vector<8x128xf32>
    %cst_21 = arith.constant 0.531063795 : f32
    %45 = vector.broadcast %cst_21 : f32 to vector<8x128xf32>
    %46 = arith.mulf %45, %44 : vector<8x128xf32>
    %47 = arith.addf %43, %46 : vector<8x128xf32>
    %cst_22 = arith.constant dense<0.000000e+00> : vector<8x128xf32>
    %48 = tpu.matmul %47, %1, %cst_22 {dimension_numbers = #tpu.dot_dimension_numbers<[1], [0], [0], [1], [0, 0, 1, 1], [], []>} : vector<8x128xf32>, vector<128x128xf32>, vector<8x128xf32> -> vector<8x128xf32>
    %49 = arith.subf %0, %48 : vector<8x128xf32>
    %cst_23 = arith.constant dense<0.000000e+00> : vector<8x128xf32>
    %50 = tpu.matmul %49, %2, %cst_23 {dimension_numbers = #tpu.dot_dimension_numbers<[1], [0], [0], [1], [0, 0, 1, 1], [], []>} : vector<8x128xf32>, vector<128x128xf32>, vector<8x128xf32> -> vector<8x128xf32>
    %51 = arith.addf %47, %50 : vector<8x128xf32>
    %cst_24 = arith.constant -0.0258155167 : f32
    %cst_25 = arith.constant 0.0258155167 : f32
    %52 = vector.broadcast %cst_24 : f32 to vector<8x128xf32>
    %53 = arith.maximumf %52, %51 : vector<8x128xf32>
    %54 = vector.broadcast %cst_25 : f32 to vector<8x128xf32>
    %55 = arith.minimumf %54, %53 : vector<8x128xf32>
    %56 = arith.subf %51, %55 : vector<8x128xf32>
    %c0_26 = arith.constant 0 : index
    %c0_27 = arith.constant 0 : index
    %57 = vector.load %arg5[%c0_26, %c0_27] : memref<8x128xf32, #tpu.memory_space<vmem>>, vector<8x128xf32>
    tpu.vector_store %arg5[%c0_26, %c0_27], %56 {strides = array<i32>} : memref<8x128xf32, #tpu.memory_space<vmem>>, vector<8x128xf32>,
    %cst_28 = arith.constant dense<0.000000e+00> : vector<8x128xf32>
    %58 = tpu.matmul %56, %1, %cst_28 {dimension_numbers = #tpu.dot_dimension_numbers<[1], [0], [0], [1], [0, 0, 1, 1], [], []>} : vector<8x128xf32>, vector<128x128xf32>, vector<8x128xf32> -> vector<8x128xf32>
    %c0_29 = arith.constant 0 : index
    %c0_30 = arith.constant 0 : index
    %59 = vector.load %arg4[%c0_29, %c0_30] : memref<8x128xf32, #tpu.memory_space<vmem>>, vector<8x128xf32>
    tpu.vector_store %arg4[%c0_29, %c0_30], %58 {strides = array<i32>} : memref<8x128xf32, #tpu.memory_space<vmem>>, vector<8x128xf32>,
    return
  }
  func.func @transform_0(%arg0: i32) -> (i32, i32) {
    %c0_i32 = arith.constant 0 : i32
    %c0_i32_0 = arith.constant 0 : i32
    return %arg0, %c0_i32 : i32, i32
  }
  func.func @transform_1(%arg0: i32) -> (i32, i32) {
    %c0_i32 = arith.constant 0 : i32
    %c0_i32_0 = arith.constant 0 : i32
    %c0_i32_1 = arith.constant 0 : i32
    return %c0_i32, %c0_i32_0 : i32, i32
  }
  func.func @transform_2(%arg0: i32) -> (i32, i32) {
    %c0_i32 = arith.constant 0 : i32
    %c0_i32_0 = arith.constant 0 : i32
    %c0_i32_1 = arith.constant 0 : i32
    return %c0_i32, %c0_i32_0 : i32, i32
  }
  func.func @transform_3(%arg0: i32) -> (i32, i32) {
    %c0_i32 = arith.constant 0 : i32
    %c0_i32_0 = arith.constant 0 : i32
    return %arg0, %c0_i32 : i32, i32
  }
  func.func @transform_4(%arg0: i32) -> (i32, i32) {
    %c0_i32 = arith.constant 0 : i32
    %c0_i32_0 = arith.constant 0 : i32
    return %arg0, %c0_i32 : i32, i32
  }
}

</mosaic_0001>

<llo_original>
// kernel: tpu_custom_call.1
$region0: #{tpu_custom_call.1}
  #allocation0 [shape = 'u32[]', space=smem, size = 0x4, offset = 0x4, fixed_abs, tag = 'smem constant byte address 0x4 - core index']
  #allocation1 [shape = 'u32[144,128]{1,0:T(1,128)}', space=vmem, size = 0x12000, scoped, tag = 'internal scratch']
  %s0 = inlined_call_operand.hbm [shape: f32[8,128], index: 0, kind: input, shape index: {}]
  %s1 = inlined_call_operand.hbm [shape: f32[128,128], index: 1, kind: input, shape index: {}]
  %s2 = inlined_call_operand.hbm [shape: f32[128,128], index: 2, kind: input, shape index: {}]
  %s3 = inlined_call_operand.hbm [shape: f32[8,128], index: 3, kind: output, shape index: {0}]
  %s4 = inlined_call_operand.hbm [shape: f32[8,128], index: 4, kind: output, shape index: {1}]
  %5 = xla_tuple %s3, %s4
  %s6 = sld [smem:[#allocation0]]
  $region42: #{tpu_custom_call.1} parent=0
    _
  %s8 = ssub.s32 1, %s6
  %s9 = scalar_select 0, %s8, %s6
  $region1: #{tpu_custom_call.1} parent=0
    #allocation2 [shape = 'u8[4096]{0}', space=vmem, size = 0x1000, scoped, tag = 'input window, operand 0, single buffered']
    #allocation3 [shape = 's32[1]{0}', space=sflag, size = 0x4, scoped, tag = 'scoped memory for tpu_custom_call.1']
    #allocation4 [shape = 's32[1]{0}', space=sflag, size = 0x4, scoped, tag = 'scoped memory for tpu_custom_call.1']
    #allocation5 [shape = 'u8[65536]{0}', space=vmem, size = 0x10000, scoped, tag = 'input window, operand 1, single buffered']
    #allocation6 [shape = 's32[1]{0}', space=sflag, size = 0x4, scoped, tag = 'scoped memory for tpu_custom_call.1']
    #allocation7 [shape = 'u8[65536]{0}', space=vmem, size = 0x10000, scoped, tag = 'input window, operand 2, single buffered']
    #allocation8 [shape = 'u8[4096]{0}', space=vmem, size = 0x1000, scoped, tag = 'output window, operand 0, single buffered']
    #allocation9 [shape = 'u8[4096]{0}', space=vmem, size = 0x1000, scoped, tag = 'output window, operand 1, single buffered']
    #allocation10 [shape = 's32[1]{0}', space=sflag, size = 0x4, scoped, tag = 'scoped memory for tpu_custom_call.1']
    %10 = vsyncpa [#allocation3], 0
    %11 = vsyncpa [#allocation6], 0
    %12 = vsyncpa [#allocation4], 0
    %13 = vsyncpa [#allocation10], 0
    // Predicated region
    $region2: #{tpu_custom_call.1} parent=1 // pred_check
      _
    $region3: #{tpu_custom_call.1} parent=1 // pred_check_branch
      %15 = sbr.rel (0) target = $region5
    $region4: #{tpu_custom_call.1} parent=1 // pred_region
      %s17 = ssub.s32 128, 128
      %18 = vsyncadd [#allocation3], %s17
      %s20 = sshll.u32 [#allocation2], 4
      %s21 = int_to_ptr.vmem [resolvable:$true] %s20
      %23 = dma.hbm_to_vmem [thread:$0]  %s0, 128, %s21, [#allocation3]
    $region5: #{tpu_custom_call.1} parent=1 // pred_fallthru
      _
    // Predicated region
    $region6: #{tpu_custom_call.1} parent=1 // pred_check
      _
    $region7: #{tpu_custom_call.1} parent=1 // pred_check_branch
      %25 = sbr.rel (0) target = $region9
    $region8: #{tpu_custom_call.1} parent=1 // pred_region
      %s27 = ssub.s32 2048, 2048
      %28 = vsyncadd [#allocation6], %s27
      %s29 = sshll.u32 [#allocation5], 4
      %s30 = int_to_ptr.vmem [resolvable:$true] %s29
      %35 = dma.hbm_to_vmem [thread:$0]  %s1, 2048, %s30, [#allocation6], 128, 128, 8
    $region9: #{tpu_custom_call.1} parent=1 // pred_fallthru
      _
    // Predicated region
    $region10: #{tpu_custom_call.1} parent=1 // pred_check
      _
    $region11: #{tpu_custom_call.1} parent=1 // pred_check_branch
      %37 = sbr.rel (0) target = $region13
    $region12: #{tpu_custom_call.1} parent=1 // pred_region
      %s39 = ssub.s32 2048, 2048
      %40 = vsyncadd [#allocation6], %s39
      %s41 = sshll.u32 [#allocation7], 4
      %s42 = int_to_ptr.vmem [resolvable:$true] %s41
      %47 = dma.hbm_to_vmem [thread:$0]  %s2, 2048, %s42, [#allocation6], 128, 128, 8
    $region13: #{tpu_custom_call.1} parent=1 // pred_fallthru
      _
    // Predicated region
    $region14: #{tpu_custom_call.1} parent=1 // pred_check
      _
    $region15: #{tpu_custom_call.1} parent=1 // pred_check_branch
      %49 = sbr.rel (0) target = $region17
    $region16: #{tpu_custom_call.1} parent=1 // pred_region
      %50 = dma.done [#allocation3], 128
    $region17: #{tpu_custom_call.1} parent=1 // pred_fallthru
      _
    // Predicated region
    $region18: #{tpu_custom_call.1} parent=1 // pred_check
      _
    $region19: #{tpu_custom_call.1} parent=1 // pred_check_branch
      %52 = sbr.rel (0) target = $region21
    $region20: #{tpu_custom_call.1} parent=1 // pred_region
      %53 = dma.done [#allocation6], 2048
    $region21: #{tpu_custom_call.1} parent=1 // pred_fallthru
      _
    // Predicated region
    $region22: #{tpu_custom_call.1} parent=1 // pred_check
      _
    $region23: #{tpu_custom_call.1} parent=1 // pred_check_branch
      %55 = sbr.rel (0) target = $region25
    $region24: #{tpu_custom_call.1} parent=1 // pred_region
      %56 = dma.done [#allocation6], 2048
    $region25: #{tpu_custom_call.1} parent=1 // pred_fallthru
      _
    %v57 = vld [vmem:[#allocation2] sm:$0xff]
    %v58 = vld [vmem:[#allocation5] sm:$0xff]
    %v59 = vld [vmem:[#allocation5 + $0x8] sm:$0xff]
    %v60 = vld [vmem:[#allocation5 + $0x10] sm:$0xff]
    %v61 = vld [vmem:[#allocation5 + $0x18] sm:$0xff]
    %v62 = vld [vmem:[#allocation5 + $0x20] sm:$0xff]
    %v63 = vld [vmem:[#allocation5 + $0x28] sm:$0xff]
    %v64 = vld [vmem:[#allocation5 + $0x30] sm:$0xff]
    %v65 = vld [vmem:[#allocation5 + $0x38] sm:$0xff]
    %v66 = vld [vmem:[#allocation5 + $0x40] sm:$0xff]
    %v67 = vld [vmem:[#allocation5 + $0x48] sm:$0xff]
    %v68 = vld [vmem:[#allocation5 + $0x50] sm:$0xff]
    %v69 = vld [vmem:[#allocation5 + $0x58] sm:$0xff]
    %v70 = vld [vmem:[#allocation5 + $0x60] sm:$0xff]
    %v71 = vld [vmem:[#allocation5 + $0x68] sm:$0xff]
    %v72 = vld [vmem:[#allocation5 + $0x70] sm:$0xff]
    %v73 = vld [vmem:[#allocation5 + $0x78] sm:$0xff]
    %v74 = vld [vmem:[#allocation7] sm:$0xff]
    %v75 = vld [vmem:[#allocation7 + $0x8] sm:$0xff]
    %v76 = vld [vmem:[#allocation7 + $0x10] sm:$0xff]
    %v77 = vld [vmem:[#allocation7 + $0x18] sm:$0xff]
    %v78 = vld [vmem:[#allocation7 + $0x20] sm:$0xff]
    %v79 = vld [vmem:[#allocation7 + $0x28] sm:$0xff]
    %v80 = vld [vmem:[#allocation7 + $0x30] sm:$0xff]
    %v81 = vld [vmem:[#allocation7 + $0x38] sm:$0xff]
    %v82 = vld [vmem:[#allocation7 + $0x40] sm:$0xff]
    %v83 = vld [vmem:[#allocation7 + $0x48] sm:$0xff]
    %v84 = vld [vmem:[#allocation7 + $0x50] sm:$0xff]
    %v85 = vld [vmem:[#allocation7 + $0x58] sm:$0xff]
    %v86 = vld [vmem:[#allocation7 + $0x60] sm:$0xff]
    %v87 = vld [vmem:[#allocation7 + $0x68] sm:$0xff]
    %v88 = vld [vmem:[#allocation7 + $0x70] sm:$0xff]
    %v89 = vld [vmem:[#allocation7 + $0x78] sm:$0xff]
    %90 = vmatprep.subr.mxu0 0.0
    %91 = vmatpush1.msra.mxu0 %v74
    %92 = vmatprep.subr.mxu0 0.0
    %93 = vmatpush1.msra.mxu0 %v75
    %94 = vmatprep.subr.mxu0 0.0
    %95 = vmatpush1.msra.mxu0 %v76
    %96 = vmatprep.subr.mxu0 0.0
    %97 = vmatpush1.msra.mxu0 %v77
    %98 = vmatprep.subr.mxu0 0.0
    %99 = vmatpush1.msra.mxu0 %v78
    %100 = vmatprep.subr.mxu0 0.0
    %101 = vmatpush1.msra.mxu0 %v79
    %102 = vmatprep.subr.mxu0 0.0
    %103 = vmatpush1.msra.mxu0 %v80
    %104 = vmatprep.subr.mxu0 0.0
    %105 = vmatpush1.msra.mxu0 %v81
    %106 = vmatprep.subr.mxu0 0.0
    %107 = vmatpush1.msra.mxu0 %v82
    %108 = vmatprep.subr.mxu0 0.0
    %109 = vmatpush1.msra.mxu0 %v83
    %110 = vmatprep.subr.mxu0 0.0
    %111 = vmatpush1.msra.mxu0 %v84
    %112 = vmatprep.subr.mxu0 0.0
    %113 = vmatpush1.msra.mxu0 %v85
    %114 = vmatprep.subr.mxu0 0.0
    %115 = vmatpush1.msra.mxu0 %v86
    %116 = vmatprep.subr.mxu0 0.0
    %117 = vmatpush1.msra.mxu0 %v87
    %118 = vmatprep.subr.mxu0 0.0
    %119 = vmatpush1.msra.mxu0 %v88
    %120 = vmatprep.subr.mxu0 0.0
    %121 = vmatpush1.msra.mxu0 %v89
    %122 = vmatprep.subr.mxu0 0.0
    %123 = vmatpush1.msra.mxu0 0.0
    %124 = vmatprep.subr.mxu0 0.0
    %125 = vmatpush1.msra.mxu0 0.0
    %126 = vmatprep.subr.mxu0 0.0
    %127 = vmatpush1.msra.mxu0 0.0
    %128 = vmatprep.subr.mxu0 0.0
    %129 = vmatpush1.msra.mxu0 0.0
    %130 = vmatprep.subr.mxu0 0.0
    %131 = vmatpush1.msra.mxu0 0.0
    %132 = vmatprep.subr.mxu0 0.0
    %133 = vmatpush1.msra.mxu0 0.0
    %134 = vmatprep.subr.mxu0 0.0
    %135 = vmatpush1.msra.mxu0 0.0
    %136 = vmatprep.subr.mxu0 0.0
    %137 = vmatpush1.msra.mxu0 0.0
    %138 = vmatprep.subr.mxu0 0.0
    %139 = vmatpush1.msra.mxu0 0.0
    %140 = vmatprep.subr.mxu0 0.0
    %141 = vmatpush1.msra.mxu0 0.0
    %142 = vmatprep.subr.mxu0 0.0
    %143 = vmatpush1.msra.mxu0 0.0
    %144 = vmatprep.subr.mxu0 0.0
    %145 = vmatpush1.msra.mxu0 0.0
    %146 = vmatprep.subr.mxu0 0.0
    %147 = vmatpush1.msra.mxu0 0.0
    %148 = vmatprep.subr.mxu0 0.0
    %149 = vmatpush1.msra.mxu0 0.0
    %150 = vmatprep.subr.mxu0 0.0
    %151 = vmatpush1.msra.mxu0 0.0
    %152 = vmatprep.subr.mxu0 0.0
    %153 = vmatpush1.msra.mxu0 0.0
    %154 = vmatprep.mubr.f32.mxu0 0.0
    %155 = vmatmul.mubr.f32.gmra.mrb[0].mxu0 %v57
    %v156 = vpop.f32.mrb[0].mxu0
    %v157 = vadd.f32 0.0, %v156
    %v158 = vpop.f32.mrb[0].mxu0
    %159 = vdwg.mxu0
    %v160 = vmax.f32 %v157, -0.025815517
    %v161 = vmin.f32 %v160, 0.025815517
    %v162 = vsub.f32 %v157, %v161
    %163 = vmatprep.subr.mxu0 0.0
    %164 = vmatpush1.msra.mxu0 %v58
    %165 = vmatprep.subr.mxu0 0.0
    %166 = vmatpush1.msra.mxu0 %v59
    %167 = vmatprep.subr.mxu0 0.0
    %168 = vmatpush1.msra.mxu0 %v60
    %169 = vmatprep.subr.mxu0 0.0
    %170 = vmatpush1.msra.mxu0 %v61
    %171 = vmatprep.subr.mxu0 0.0
    %172 = vmatpush1.msra.mxu0 %v62
    %173 = vmatprep.subr.mxu0 0.0
    %174 = vmatpush1.msra.mxu0 %v63
    %175 = vmatprep.subr.mxu0 0.0
    %176 = vmatpush1.msra.mxu0 %v64
    %177 = vmatprep.subr.mxu0 0.0
    %178 = vmatpush1.msra.mxu0 %v65
    %179 = vmatprep.subr.mxu0 0.0
    %180 = vmatpush1.msra.mxu0 %v66
    %181 = vmatprep.subr.mxu0 0.0
    %182 = vmatpush1.msra.mxu0 %v67
    %183 = vmatprep.subr.mxu0 0.0
    %184 = vmatpush1.msra.mxu0 %v68
    %185 = vmatprep.subr.mxu0 0.0
    %186 = vmatpush1.msra.mxu0 %v69
    %187 = vmatprep.subr.mxu0 0.0
    %188 = vmatpush1.msra.mxu0 %v70
    %189 = vmatprep.subr.mxu0 0.0
    %190 = vmatpush1.msra.mxu0 %v71
    %191 = vmatprep.subr.mxu0 0.0
    %192 = vmatpush1.msra.mxu0 %v72
    %193 = vmatprep.subr.mxu0 0.0
    %194 = vmatpush1.msra.mxu0 %v73
    %195 = vmatprep.subr.mxu0 0.0
    %196 = vmatpush1.msra.mxu0 0.0
    %197 = vmatprep.subr.mxu0 0.0
    %198 = vmatpush1.msra.mxu0 0.0
    %199 = vmatprep.subr.mxu0 0.0
    %200 = vmatpush1.msra.mxu0 0.0
    %201 = vmatprep.subr.mxu0 0.0
    %202 = vmatpush1.msra.mxu0 0.0
    %203 = vmatprep.subr.mxu0 0.0
    %204 = vmatpush1.msra.mxu0 0.0
    %205 = vmatprep.subr.mxu0 0.0
    %206 = vmatpush1.msra.mxu0 0.0
    %207 = vmatprep.subr.mxu0 0.0
    %208 = vmatpush1.msra.mxu0 0.0
    %209 = vmatprep.subr.mxu0 0.0
    %210 = vmatpush1.msra.mxu0 0.0
    %211 = vmatprep.subr.mxu0 0.0
    %212 = vmatpush1.msra.mxu0 0.0
    %213 = vmatprep.subr.mxu0 0.0
    %214 = vmatpush1.msra.mxu0 0.0
    %215 = vmatprep.subr.mxu0 0.0
    %216 = vmatpush1.msra.mxu0 0.0
    %217 = vmatprep.subr.mxu0 0.0
    %218 = vmatpush1.msra.mxu0 0.0
    %219 = vmatprep.subr.mxu0 0.0
    %220 = vmatpush1.msra.mxu0 0.0
    %221 = vmatprep.subr.mxu0 0.0
    %222 = vmatpush1.msra.mxu0 0.0
    %223 = vmatprep.subr.mxu0 0.0
    %224 = vmatpush1.msra.mxu0 0.0
    %225 = vmatprep.subr.mxu0 0.0
    %226 = vmatpush1.msra.mxu0 0.0
    %227 = vmatprep.mubr.f32.mxu0 0.0
    %228 = vmatmul.mubr.f32.gmra.mrb[0].mxu0 %v162
    %v229 = vpop.f32.mrb[0].mxu0
    %v230 = vadd.f32 0.0, %v229
    %v231 = vpop.f32.mrb[0].mxu0
    %232 = vdwg.mxu0
    %v233 = vsub.f32 %v57, %v230
    %234 = vmatprep.subr.mxu0 0.0
    %235 = vmatpush1.msra.mxu0 %v74
    %236 = vmatprep.subr.mxu0 0.0
    %237 = vmatpush1.msra.mxu0 %v75
    %238 = vmatprep.subr.mxu0 0.0
    %239 = vmatpush1.msra.mxu0 %v76
    %240 = vmatprep.subr.mxu0 0.0
    %241 = vmatpush1.msra.mxu0 %v77
    %242 = vmatprep.subr.mxu0 0.0
    %243 = vmatpush1.msra.mxu0 %v78
    %244 = vmatprep.subr.mxu0 0.0
    %245 = vmatpush1.msra.mxu0 %v79
    %246 = vmatprep.subr.mxu0 0.0
    %247 = vmatpush1.msra.mxu0 %v80
    %248 = vmatprep.subr.mxu0 0.0
    %249 = vmatpush1.msra.mxu0 %v81
    %250 = vmatprep.subr.mxu0 0.0
    %251 = vmatpush1.msra.mxu0 %v82
    %252 = vmatprep.subr.mxu0 0.0
    %253 = vmatpush1.msra.mxu0 %v83
    %254 = vmatprep.subr.mxu0 0.0
    %255 = vmatpush1.msra.mxu0 %v84
    %256 = vmatprep.subr.mxu0 0.0
    %257 = vmatpush1.msra.mxu0 %v85
    %258 = vmatprep.subr.mxu0 0.0
    %259 = vmatpush1.msra.mxu0 %v86
    %260 = vmatprep.subr.mxu0 0.0
    %261 = vmatpush1.msra.mxu0 %v87
    %262 = vmatprep.subr.mxu0 0.0
    %263 = vmatpush1.msra.mxu0 %v88
    %264 = vmatprep.subr.mxu0 0.0
    %265 = vmatpush1.msra.mxu0 %v89
    %266 = vmatprep.subr.mxu0 0.0
    %267 = vmatpush1.msra.mxu0 0.0
    %268 = vmatprep.subr.mxu0 0.0
    %269 = vmatpush1.msra.mxu0 0.0
    %270 = vmatprep.subr.mxu0 0.0
    %271 = vmatpush1.msra.mxu0 0.0
    %272 = vmatprep.subr.mxu0 0.0
    %273 = vmatpush1.msra.mxu0 0.0
    %274 = vmatprep.subr.mxu0 0.0
    %275 = vmatpush1.msra.mxu0 0.0
    %276 = vmatprep.subr.mxu0 0.0
    %277 = vmatpush1.msra.mxu0 0.0
    %278 = vmatprep.subr.mxu0 0.0
    %279 = vmatpush1.msra.mxu0 0.0
    %280 = vmatprep.subr.mxu0 0.0
    %281 = vmatpush1.msra.mxu0 0.0
    %282 = vmatprep.subr.mxu0 0.0
    %283 = vmatpush1.msra.mxu0 0.0
    %284 = vmatprep.subr.mxu0 0.0
    %285 = vmatpush1.msra.mxu0 0.0
    %286 = vmatprep.subr.mxu0 0.0
    %287 = vmatpush1.msra.mxu0 0.0
    %288 = vmatprep.subr.mxu0 0.0
    %289 = vmatpush1.msra.mxu0 0.0
    %290 = vmatprep.subr.mxu0 0.0
    %291 = vmatpush1.msra.mxu0 0.0
    %292 = vmatprep.subr.mxu0 0.0
    %293 = vmatpush1.msra.mxu0 0.0
    %294 = vmatprep.subr.mxu0 0.0
    %295 = vmatpush1.msra.mxu0 0.0
    %296 = vmatprep.subr.mxu0 0.0
    %297 = vmatpush1.msra.mxu0 0.0
    %298 = vmatprep.mubr.f32.mxu0 0.0
    %299 = vmatmul.mubr.f32.gmra.mrb[0].mxu0 %v233
    %v300 = vpop.f32.mrb[0].mxu0
    %v301 = vadd.f32 0.0, %v300
    %v302 = vpop.f32.mrb[0].mxu0
    %303 = vdwg.mxu0
    %v304 = vadd.f32 %v162, %v301
    %v305 = vmax.f32 %v304, -0.025815517
    %v306 = vmin.f32 %v305, 0.025815517
    %v307 = vsub.f32 %v304, %v306
    %v308 = vsub.f32 %v307, %v162
    %v309 = vmul.f32 %v308, 0.2817535
    %v310 = vadd.f32 %v307, %v309
    %311 = vmatprep.subr.mxu0 0.0
    %312 = vmatpush1.msra.mxu0 %v58
    %313 = vmatprep.subr.mxu0 0.0
    %314 = vmatpush1.msra.mxu0 %v59
    %315 = vmatprep.subr.mxu0 0.0
    %316 = vmatpush1.msra.mxu0 %v60
    %317 = vmatprep.subr.mxu0 0.0
    %318 = vmatpush1.msra.mxu0 %v61
    %319 = vmatprep.subr.mxu0 0.0
    %320 = vmatpush1.msra.mxu0 %v62
    %321 = vmatprep.subr.mxu0 0.0
    %322 = vmatpush1.msra.mxu0 %v63
    %323 = vmatprep.subr.mxu0 0.0
    %324 = vmatpush1.msra.mxu0 %v64
    %325 = vmatprep.subr.mxu0 0.0
    %326 = vmatpush1.msra.mxu0 %v65
    %327 = vmatprep.subr.mxu0 0.0
    %328 = vmatpush1.msra.mxu0 %v66
    %329 = vmatprep.subr.mxu0 0.0
    %330 = vmatpush1.msra.mxu0 %v67
    %331 = vmatprep.subr.mxu0 0.0
    %332 = vmatpush1.msra.mxu0 %v68
    %333 = vmatprep.subr.mxu0 0.0
    %334 = vmatpush1.msra.mxu0 %v69
    %335 = vmatprep.subr.mxu0 0.0
    %336 = vmatpush1.msra.mxu0 %v70
    %337 = vmatprep.subr.mxu0 0.0
    %338 = vmatpush1.msra.mxu0 %v71
    %339 = vmatprep.subr.mxu0 0.0
    %340 = vmatpush1.msra.mxu0 %v72
    %341 = vmatprep.subr.mxu0 0.0
    %342 = vmatpush1.msra.mxu0 %v73
    %343 = vmatprep.subr.mxu0 0.0
    %344 = vmatpush1.msra.mxu0 0.0
    %345 = vmatprep.subr.mxu0 0.0
    %346 = vmatpush1.msra.mxu0 0.0
    %347 = vmatprep.subr.mxu0 0.0
    %348 = vmatpush1.msra.mxu0 0.0
    %349 = vmatprep.subr.mxu0 0.0
    %350 = vmatpush1.msra.mxu0 0.0
    %351 = vmatprep.subr.mxu0 0.0
    %352 = vmatpush1.msra.mxu0 0.0
    %353 = vmatprep.subr.mxu0 0.0
    %354 = vmatpush1.msra.mxu0 0.0
    %355 = vmatprep.subr.mxu0 0.0
    %356 = vmatpush1.msra.mxu0 0.0
    %357 = vmatprep.subr.mxu0 0.0
    %358 = vmatpush1.msra.mxu0 0.0
    %359 = vmatprep.subr.mxu0 0.0
    %360 = vmatpush1.msra.mxu0 0.0
    %361 = vmatprep.subr.mxu0 0.0
    %362 = vmatpush1.msra.mxu0 0.0
    %363 = vmatprep.subr.mxu0 0.0
    %364 = vmatpush1.msra.mxu0 0.0
    %365 = vmatprep.subr.mxu0 0.0
    %366 = vmatpush1.msra.mxu0 0.0
    %367 = vmatprep.subr.mxu0 0.0
    %368 = vmatpush1.msra.mxu0 0.0
    %369 = vmatprep.subr.mxu0 0.0
    %370 = vmatpush1.msra.mxu0 0.0
    %371 = vmatprep.subr.mxu0 0.0
    %372 = vmatpush1.msra.mxu0 0.0
    %373 = vmatprep.subr.mxu0 0.0
    %374 = vmatpush1.msra.mxu0 0.0
    %375 = vmatprep.mubr.f32.mxu0 0.0
    %376 = vmatmul.mubr.f32.gmra.mrb[0].mxu0 %v310
    %v377 = vpop.f32.mrb[0].mxu0
    %v378 = vadd.f32 0.0, %v377
    %v379 = vpop.f32.mrb[0].mxu0
    %380 = vdwg.mxu0
    %v381 = vsub.f32 %v57, %v378
    %382 = vmatprep.subr.mxu0 0.0
    %383 = vmatpush1.msra.mxu0 %v74
    %384 = vmatprep.subr.mxu0 0.0
    %385 = vmatpush1.msra.mxu0 %v75
    %386 = vmatprep.subr.mxu0 0.0
    %387 = vmatpush1.msra.mxu0 %v76
    %388 = vmatprep.subr.mxu0 0.0
    %389 = vmatpush1.msra.mxu0 %v77
    %390 = vmatprep.subr.mxu0 0.0
    %391 = vmatpush1.msra.mxu0 %v78
    %392 = vmatprep.subr.mxu0 0.0
    %393 = vmatpush1.msra.mxu0 %v79
    %394 = vmatprep.subr.mxu0 0.0
    %395 = vmatpush1.msra.mxu0 %v80
    %396 = vmatprep.subr.mxu0 0.0
    %397 = vmatpush1.msra.mxu0 %v81
    %398 = vmatprep.subr.mxu0 0.0
    %399 = vmatpush1.msra.mxu0 %v82
    %400 = vmatprep.subr.mxu0 0.0
    %401 = vmatpush1.msra.mxu0 %v83
    %402 = vmatprep.subr.mxu0 0.0
    %403 = vmatpush1.msra.mxu0 %v84
    %404 = vmatprep.subr.mxu0 0.0
    %405 = vmatpush1.msra.mxu0 %v85
    %406 = vmatprep.subr.mxu0 0.0
    %407 = vmatpush1.msra.mxu0 %v86
    %408 = vmatprep.subr.mxu0 0.0
    %409 = vmatpush1.msra.mxu0 %v87
    %410 = vmatprep.subr.mxu0 0.0
    %411 = vmatpush1.msra.mxu0 %v88
    %412 = vmatprep.subr.mxu0 0.0
    %413 = vmatpush1.msra.mxu0 %v89
    %414 = vmatprep.subr.mxu0 0.0
    %415 = vmatpush1.msra.mxu0 0.0
    %416 = vmatprep.subr.mxu0 0.0
    %417 = vmatpush1.msra.mxu0 0.0
    %418 = vmatprep.subr.mxu0 0.0
    %419 = vmatpush1.msra.mxu0 0.0
    %420 = vmatprep.subr.mxu0 0.0
    %421 = vmatpush1.msra.mxu0 0.0
    %422 = vmatprep.subr.mxu0 0.0
    %423 = vmatpush1.msra.mxu0 0.0
    %424 = vmatprep.subr.mxu0 0.0
    %425 = vmatpush1.msra.mxu0 0.0
    %426 = vmatprep.subr.mxu0 0.0
    %427 = vmatpush1.msra.mxu0 0.0
    %428 = vmatprep.subr.mxu0 0.0
    %429 = vmatpush1.msra.mxu0 0.0
    %430 = vmatprep.subr.mxu0 0.0
    %431 = vmatpush1.msra.mxu0 0.0
    %432 = vmatprep.subr.mxu0 0.0
    %433 = vmatpush1.msra.mxu0 0.0
    %434 = vmatprep.subr.mxu0 0.0
    %435 = vmatpush1.msra.mxu0 0.0
    %436 = vmatprep.subr.mxu0 0.0
    %437 = vmatpush1.msra.mxu0 0.0
    %438 = vmatprep.subr.mxu0 0.0
    %439 = vmatpush1.msra.mxu0 0.0
    %440 = vmatprep.subr.mxu0 0.0
    %441 = vmatpush1.msra.mxu0 0.0
    %442 = vmatprep.subr.mxu0 0.0
    %443 = vmatpush1.msra.mxu0 0.0
    %444 = vmatprep.subr.mxu0 0.0
    %445 = vmatpush1.msra.mxu0 0.0
    %446 = vmatprep.mubr.f32.mxu0 0.0
    %447 = vmatmul.mubr.f32.gmra.mrb[0].mxu0 %v381
    %v448 = vpop.f32.mrb[0].mxu0
    %v449 = vadd.f32 0.0, %v448
    %v450 = vpop.f32.mrb[0].mxu0
    %451 = vdwg.mxu0
    %v452 = vadd.f32 %v310, %v449
    %v453 = vmax.f32 %v452, -0.025815517
    %v454 = vmin.f32 %v453, 0.025815517
    %v455 = vsub.f32 %v452, %v454
    %v456 = vsub.f32 %v455, %v307
    %v457 = vmul.f32 %v456, 0.43404278
    %v458 = vadd.f32 %v455, %v457
    %459 = vmatprep.subr.mxu0 0.0
    %460 = vmatpush1.msra.mxu0 %v58
    %461 = vmatprep.subr.mxu0 0.0
    %462 = vmatpush1.msra.mxu0 %v59
    %463 = vmatprep.subr.mxu0 0.0
    %464 = vmatpush1.msra.mxu0 %v60
    %465 = vmatprep.subr.mxu0 0.0
    %466 = vmatpush1.msra.mxu0 %v61
    %467 = vmatprep.subr.mxu0 0.0
    %468 = vmatpush1.msra.mxu0 %v62
    %469 = vmatprep.subr.mxu0 0.0
    %470 = vmatpush1.msra.mxu0 %v63
    %471 = vmatprep.subr.mxu0 0.0
    %472 = vmatpush1.msra.mxu0 %v64
    %473 = vmatprep.subr.mxu0 0.0
    %474 = vmatpush1.msra.mxu0 %v65
    %475 = vmatprep.subr.mxu0 0.0
    %476 = vmatpush1.msra.mxu0 %v66
    %477 = vmatprep.subr.mxu0 0.0
    %478 = vmatpush1.msra.mxu0 %v67
    %479 = vmatprep.subr.mxu0 0.0
    %480 = vmatpush1.msra.mxu0 %v68
    %481 = vmatprep.subr.mxu0 0.0
    %482 = vmatpush1.msra.mxu0 %v69
    %483 = vmatprep.subr.mxu0 0.0
    %484 = vmatpush1.msra.mxu0 %v70
    %485 = vmatprep.subr.mxu0 0.0
    %486 = vmatpush1.msra.mxu0 %v71
    %487 = vmatprep.subr.mxu0 0.0
    %488 = vmatpush1.msra.mxu0 %v72
    %489 = vmatprep.subr.mxu0 0.0
    %490 = vmatpush1.msra.mxu0 %v73
    %491 = vmatprep.subr.mxu0 0.0
    %492 = vmatpush1.msra.mxu0 0.0
    %493 = vmatprep.subr.mxu0 0.0
    %494 = vmatpush1.msra.mxu0 0.0
    %495 = vmatprep.subr.mxu0 0.0
    %496 = vmatpush1.msra.mxu0 0.0
    %497 = vmatprep.subr.mxu0 0.0
    %498 = vmatpush1.msra.mxu0 0.0
    %499 = vmatprep.subr.mxu0 0.0
    %500 = vmatpush1.msra.mxu0 0.0
    %501 = vmatprep.subr.mxu0 0.0
    %502 = vmatpush1.msra.mxu0 0.0
    %503 = vmatprep.subr.mxu0 0.0
    %504 = vmatpush1.msra.mxu0 0.0
    %505 = vmatprep.subr.mxu0 0.0
    %506 = vmatpush1.msra.mxu0 0.0
    %507 = vmatprep.subr.mxu0 0.0
    %508 = vmatpush1.msra.mxu0 0.0
    %509 = vmatprep.subr.mxu0 0.0
    %510 = vmatpush1.msra.mxu0 0.0
    %511 = vmatprep.subr.mxu0 0.0
    %512 = vmatpush1.msra.mxu0 0.0
    %513 = vmatprep.subr.mxu0 0.0
    %514 = vmatpush1.msra.mxu0 0.0
    %515 = vmatprep.subr.mxu0 0.0
    %516 = vmatpush1.msra.mxu0 0.0
    %517 = vmatprep.subr.mxu0 0.0
    %518 = vmatpush1.msra.mxu0 0.0
    %519 = vmatprep.subr.mxu0 0.0
    %520 = vmatpush1.msra.mxu0 0.0
    %521 = vmatprep.subr.mxu0 0.0
    %522 = vmatpush1.msra.mxu0 0.0
    %523 = vmatprep.mubr.f32.mxu0 0.0
    %524 = vmatmul.mubr.f32.gmra.mrb[0].mxu0 %v458
    %v525 = vpop.f32.mrb[0].mxu0
    %v526 = vadd.f32 0.0, %v525
    %v527 = vpop.f32.mrb[0].mxu0
    %528 = vdwg.mxu0
    %v529 = vsub.f32 %v57, %v526
    %530 = vmatprep.subr.mxu0 0.0
    %531 = vmatpush1.msra.mxu0 %v74
    %532 = vmatprep.subr.mxu0 0.0
    %533 = vmatpush1.msra.mxu0 %v75
    %534 = vmatprep.subr.mxu0 0.0
    %535 = vmatpush1.msra.mxu0 %v76
    %536 = vmatprep.subr.mxu0 0.0
    %537 = vmatpush1.msra.mxu0 %v77
    %538 = vmatprep.subr.mxu0 0.0
    %539 = vmatpush1.msra.mxu0 %v78
    %540 = vmatprep.subr.mxu0 0.0
    %541 = vmatpush1.msra.mxu0 %v79
    %542 = vmatprep.subr.mxu0 0.0
    %543 = vmatpush1.msra.mxu0 %v80
    %544 = vmatprep.subr.mxu0 0.0
    %545 = vmatpush1.msra.mxu0 %v81
    %546 = vmatprep.subr.mxu0 0.0
    %547 = vmatpush1.msra.mxu0 %v82
    %548 = vmatprep.subr.mxu0 0.0
    %549 = vmatpush1.msra.mxu0 %v83
    %550 = vmatprep.subr.mxu0 0.0
    %551 = vmatpush1.msra.mxu0 %v84
    %552 = vmatprep.subr.mxu0 0.0
    %553 = vmatpush1.msra.mxu0 %v85
    %554 = vmatprep.subr.mxu0 0.0
    %555 = vmatpush1.msra.mxu0 %v86
    %556 = vmatprep.subr.mxu0 0.0
    %557 = vmatpush1.msra.mxu0 %v87
    %558 = vmatprep.subr.mxu0 0.0
    %559 = vmatpush1.msra.mxu0 %v88
    %560 = vmatprep.subr.mxu0 0.0
    %561 = vmatpush1.msra.mxu0 %v89
    %562 = vmatprep.subr.mxu0 0.0
    %563 = vmatpush1.msra.mxu0 0.0
    %564 = vmatprep.subr.mxu0 0.0
    %565 = vmatpush1.msra.mxu0 0.0
    %566 = vmatprep.subr.mxu0 0.0
    %567 = vmatpush1.msra.mxu0 0.0
    %568 = vmatprep.subr.mxu0 0.0
    %569 = vmatpush1.msra.mxu0 0.0
    %570 = vmatprep.subr.mxu0 0.0
    %571 = vmatpush1.msra.mxu0 0.0
    %572 = vmatprep.subr.mxu0 0.0
    %573 = vmatpush1.msra.mxu0 0.0
    %574 = vmatprep.subr.mxu0 0.0
    %575 = vmatpush1.msra.mxu0 0.0
    %576 = vmatprep.subr.mxu0 0.0
    %577 = vmatpush1.msra.mxu0 0.0
    %578 = vmatprep.subr.mxu0 0.0
    %579 = vmatpush1.msra.mxu0 0.0
    %580 = vmatprep.subr.mxu0 0.0
    %581 = vmatpush1.msra.mxu0 0.0
    %582 = vmatprep.subr.mxu0 0.0
    %583 = vmatpush1.msra.mxu0 0.0
    %584 = vmatprep.subr.mxu0 0.0
    %585 = vmatpush1.msra.mxu0 0.0
    %586 = vmatprep.subr.mxu0 0.0
    %587 = vmatpush1.msra.mxu0 0.0
    %588 = vmatprep.subr.mxu0 0.0
    %589 = vmatpush1.msra.mxu0 0.0
    %590 = vmatprep.subr.mxu0 0.0
    %591 = vmatpush1.msra.mxu0 0.0
    %592 = vmatprep.subr.mxu0 0.0
    %593 = vmatpush1.msra.mxu0 0.0
    %594 = vmatprep.mubr.f32.mxu0 0.0
    %595 = vmatmul.mubr.f32.gmra.mrb[0].mxu0 %v529
    %v596 = vpop.f32.mrb[0].mxu0
    %v597 = vadd.f32 0.0, %v596
    %v598 = vpop.f32.mrb[0].mxu0
    %599 = vdwg.mxu0
    %v600 = vadd.f32 %v458, %v597
    %v601 = vmax.f32 %v600, -0.025815517
    %v602 = vmin.f32 %v601, 0.025815517
    %v603 = vsub.f32 %v600, %v602
    %v604 = vsub.f32 %v603, %v455
    %v605 = vmul.f32 %v604, 0.5310638
    %v606 = vadd.f32 %v603, %v605
    %607 = vmatprep.subr.mxu0 0.0
    %608 = vmatpush1.msra.mxu0 %v58
    %609 = vmatprep.subr.mxu0 0.0
    %610 = vmatpush1.msra.mxu0 %v59
    %611 = vmatprep.subr.mxu0 0.0
    %612 = vmatpush1.msra.mxu0 %v60
    %613 = vmatprep.subr.mxu0 0.0
    %614 = vmatpush1.msra.mxu0 %v61
    %615 = vmatprep.subr.mxu0 0.0
    %616 = vmatpush1.msra.mxu0 %v62
    %617 = vmatprep.subr.mxu0 0.0
    %618 = vmatpush1.msra.mxu0 %v63
    %619 = vmatprep.subr.mxu0 0.0
    %620 = vmatpush1.msra.mxu0 %v64
    %621 = vmatprep.subr.mxu0 0.0
    %622 = vmatpush1.msra.mxu0 %v65
    %623 = vmatprep.subr.mxu0 0.0
    %624 = vmatpush1.msra.mxu0 %v66
    %625 = vmatprep.subr.mxu0 0.0
    %626 = vmatpush1.msra.mxu0 %v67
    %627 = vmatprep.subr.mxu0 0.0
    %628 = vmatpush1.msra.mxu0 %v68
    %629 = vmatprep.subr.mxu0 0.0
    %630 = vmatpush1.msra.mxu0 %v69
    %631 = vmatprep.subr.mxu0 0.0
    %632 = vmatpush1.msra.mxu0 %v70
    %633 = vmatprep.subr.mxu0 0.0
    %634 = vmatpush1.msra.mxu0 %v71
    %635 = vmatprep.subr.mxu0 0.0
    %636 = vmatpush1.msra.mxu0 %v72
    %637 = vmatprep.subr.mxu0 0.0
    %638 = vmatpush1.msra.mxu0 %v73
    %639 = vmatprep.subr.mxu0 0.0
    %640 = vmatpush1.msra.mxu0 0.0
    %641 = vmatprep.subr.mxu0 0.0
    %642 = vmatpush1.msra.mxu0 0.0
    %643 = vmatprep.subr.mxu0 0.0
    %644 = vmatpush1.msra.mxu0 0.0
    %645 = vmatprep.subr.mxu0 0.0
    %646 = vmatpush1.msra.mxu0 0.0
    %647 = vmatprep.subr.mxu0 0.0
    %648 = vmatpush1.msra.mxu0 0.0
    %649 = vmatprep.subr.mxu0 0.0
    %650 = vmatpush1.msra.mxu0 0.0
    %651 = vmatprep.subr.mxu0 0.0
    %652 = vmatpush1.msra.mxu0 0.0
    %653 = vmatprep.subr.mxu0 0.0
    %654 = vmatpush1.msra.mxu0 0.0
    %655 = vmatprep.subr.mxu0 0.0
    %656 = vmatpush1.msra.mxu0 0.0
    %657 = vmatprep.subr.mxu0 0.0
    %658 = vmatpush1.msra.mxu0 0.0
    %659 = vmatprep.subr.mxu0 0.0
    %660 = vmatpush1.msra.mxu0 0.0
    %661 = vmatprep.subr.mxu0 0.0
    %662 = vmatpush1.msra.mxu0 0.0
    %663 = vmatprep.subr.mxu0 0.0
    %664 = vmatpush1.msra.mxu0 0.0
    %665 = vmatprep.subr.mxu0 0.0
    %666 = vmatpush1.msra.mxu0 0.0
    %667 = vmatprep.subr.mxu0 0.0
    %668 = vmatpush1.msra.mxu0 0.0
    %669 = vmatprep.subr.mxu0 0.0
    %670 = vmatpush1.msra.mxu0 0.0
    %671 = vmatprep.mubr.f32.mxu0 0.0
    %672 = vmatmul.mubr.f32.gmra.mrb[0].mxu0 %v606
    %v673 = vpop.f32.mrb[0].mxu0
    %v674 = vadd.f32 0.0, %v673
    %v675 = vpop.f32.mrb[0].mxu0
    %676 = vdwg.mxu0
    %v677 = vsub.f32 %v57, %v674
    %678 = vmatprep.subr.mxu0 0.0
    %679 = vmatpush1.msra.mxu0 %v74
    %680 = vmatprep.subr.mxu0 0.0
    %681 = vmatpush1.msra.mxu0 %v75
    %682 = vmatprep.subr.mxu0 0.0
    %683 = vmatpush1.msra.mxu0 %v76
    %684 = vmatprep.subr.mxu0 0.0
    %685 = vmatpush1.msra.mxu0 %v77
    %686 = vmatprep.subr.mxu0 0.0
    %687 = vmatpush1.msra.mxu0 %v78
    %688 = vmatprep.subr.mxu0 0.0
    %689 = vmatpush1.msra.mxu0 %v79
    %690 = vmatprep.subr.mxu0 0.0
    %691 = vmatpush1.msra.mxu0 %v80
    %692 = vmatprep.subr.mxu0 0.0
    %693 = vmatpush1.msra.mxu0 %v81
    %694 = vmatprep.subr.mxu0 0.0
    %695 = vmatpush1.msra.mxu0 %v82
    %696 = vmatprep.subr.mxu0 0.0
    %697 = vmatpush1.msra.mxu0 %v83
    %698 = vmatprep.subr.mxu0 0.0
    %699 = vmatpush1.msra.mxu0 %v84
    %700 = vmatprep.subr.mxu0 0.0
    %701 = vmatpush1.msra.mxu0 %v85
    %702 = vmatprep.subr.mxu0 0.0
    %703 = vmatpush1.msra.mxu0 %v86
    %704 = vmatprep.subr.mxu0 0.0
    %705 = vmatpush1.msra.mxu0 %v87
    %706 = vmatprep.subr.mxu0 0.0
    %707 = vmatpush1.msra.mxu0 %v88
    %708 = vmatprep.subr.mxu0 0.0
    %709 = vmatpush1.msra.mxu0 %v89
    %710 = vmatprep.subr.mxu0 0.0
    %711 = vmatpush1.msra.mxu0 0.0
    %712 = vmatprep.subr.mxu0 0.0
    %713 = vmatpush1.msra.mxu0 0.0
    %714 = vmatprep.subr.mxu0 0.0
    %715 = vmatpush1.msra.mxu0 0.0
    %716 = vmatprep.subr.mxu0 0.0
    %717 = vmatpush1.msra.mxu0 0.0
    %718 = vmatprep.subr.mxu0 0.0
    %719 = vmatpush1.msra.mxu0 0.0
    %720 = vmatprep.subr.mxu0 0.0
    %721 = vmatpush1.msra.mxu0 0.0
    %722 = vmatprep.subr.mxu0 0.0
    %723 = vmatpush1.msra.mxu0 0.0
    %724 = vmatprep.subr.mxu0 0.0
    %725 = vmatpush1.msra.mxu0 0.0
    %726 = vmatprep.subr.mxu0 0.0
    %727 = vmatpush1.msra.mxu0 0.0
    %728 = vmatprep.subr.mxu0 0.0
    %729 = vmatpush1.msra.mxu0 0.0
    %730 = vmatprep.subr.mxu0 0.0
    %731 = vmatpush1.msra.mxu0 0.0
    %732 = vmatprep.subr.mxu0 0.0
    %733 = vmatpush1.msra.mxu0 0.0
    %734 = vmatprep.subr.mxu0 0.0
    %735 = vmatpush1.msra.mxu0 0.0
    %736 = vmatprep.subr.mxu0 0.0
    %737 = vmatpush1.msra.mxu0 0.0
    %738 = vmatprep.subr.mxu0 0.0
    %739 = vmatpush1.msra.mxu0 0.0
    %740 = vmatprep.subr.mxu0 0.0
    %741 = vmatpush1.msra.mxu0 0.0
    %742 = vmatprep.mubr.f32.mxu0 0.0
    %743 = vmatmul.mubr.f32.gmra.mrb[0].mxu0 %v677
    %v744 = vpop.f32.mrb[0].mxu0
    %v745 = vadd.f32 0.0, %v744
    %v746 = vpop.f32.mrb[0].mxu0
    %747 = vdwg.mxu0
    %v748 = vadd.f32 %v606, %v745
    %v749 = vmax.f32 %v748, -0.025815517
    %v750 = vmin.f32 %v749, 0.025815517
    %v751 = vsub.f32 %v748, %v750
    %752 = vst [vmem:[#allocation9] sm:$0xff] %v751
    %753 = vmatprep.subr.mxu0 0.0
    %754 = vmatpush1.msra.mxu0 %v58
    %755 = vmatprep.subr.mxu0 0.0
    %756 = vmatpush1.msra.mxu0 %v59
    %757 = vmatprep.subr.mxu0 0.0
    %758 = vmatpush1.msra.mxu0 %v60
    %759 = vmatprep.subr.mxu0 0.0
    %760 = vmatpush1.msra.mxu0 %v61
    %761 = vmatprep.subr.mxu0 0.0
    %762 = vmatpush1.msra.mxu0 %v62
    %763 = vmatprep.subr.mxu0 0.0
    %764 = vmatpush1.msra.mxu0 %v63
    %765 = vmatprep.subr.mxu0 0.0
    %766 = vmatpush1.msra.mxu0 %v64
    %767 = vmatprep.subr.mxu0 0.0
    %768 = vmatpush1.msra.mxu0 %v65
    %769 = vmatprep.subr.mxu0 0.0
    %770 = vmatpush1.msra.mxu0 %v66
    %771 = vmatprep.subr.mxu0 0.0
    %772 = vmatpush1.msra.mxu0 %v67
    %773 = vmatprep.subr.mxu0 0.0
    %774 = vmatpush1.msra.mxu0 %v68
    %775 = vmatprep.subr.mxu0 0.0
    %776 = vmatpush1.msra.mxu0 %v69
    %777 = vmatprep.subr.mxu0 0.0
    %778 = vmatpush1.msra.mxu0 %v70
    %779 = vmatprep.subr.mxu0 0.0
    %780 = vmatpush1.msra.mxu0 %v71
    %781 = vmatprep.subr.mxu0 0.0
    %782 = vmatpush1.msra.mxu0 %v72
    %783 = vmatprep.subr.mxu0 0.0
    %784 = vmatpush1.msra.mxu0 %v73
    %785 = vmatprep.subr.mxu0 0.0
    %786 = vmatpush1.msra.mxu0 0.0
    %787 = vmatprep.subr.mxu0 0.0
    %788 = vmatpush1.msra.mxu0 0.0
    %789 = vmatprep.subr.mxu0 0.0
    %790 = vmatpush1.msra.mxu0 0.0
    %791 = vmatprep.subr.mxu0 0.0
    %792 = vmatpush1.msra.mxu0 0.0
    %793 = vmatprep.subr.mxu0 0.0
    %794 = vmatpush1.msra.mxu0 0.0
    %795 = vmatprep.subr.mxu0 0.0
    %796 = vmatpush1.msra.mxu0 0.0
    %797 = vmatprep.subr.mxu0 0.0
    %798 = vmatpush1.msra.mxu0 0.0
    %799 = vmatprep.subr.mxu0 0.0
    %800 = vmatpush1.msra.mxu0 0.0
    %801 = vmatprep.subr.mxu0 0.0
    %802 = vmatpush1.msra.mxu0 0.0
    %803 = vmatprep.subr.mxu0 0.0
    %804 = vmatpush1.msra.mxu0 0.0
    %805 = vmatprep.subr.mxu0 0.0
    %806 = vmatpush1.msra.mxu0 0.0
    %807 = vmatprep.subr.mxu0 0.0
    %808 = vmatpush1.msra.mxu0 0.0
    %809 = vmatprep.subr.mxu0 0.0
    %810 = vmatpush1.msra.mxu0 0.0
    %811 = vmatprep.subr.mxu0 0.0
    %812 = vmatpush1.msra.mxu0 0.0
    %813 = vmatprep.subr.mxu0 0.0
    %814 = vmatpush1.msra.mxu0 0.0
    %815 = vmatprep.subr.mxu0 0.0
    %816 = vmatpush1.msra.mxu0 0.0
    %817 = vmatprep.mubr.f32.mxu0 0.0
    %818 = vmatmul.mubr.f32.gmra.mrb[0].mxu0 %v751
    %v819 = vpop.f32.mrb[0].mxu0
    %v820 = vadd.f32 0.0, %v819
    %v821 = vpop.f32.mrb[0].mxu0
    %822 = vdwg.mxu0
    %823 = vst [vmem:[#allocation8] sm:$0xff] %v820
    // Predicated region
    $region26: #{tpu_custom_call.1} parent=1 // pred_check
      _
    $region27: #{tpu_custom_call.1} parent=1 // pred_check_branch
      %825 = sbr.rel (0) target = $region29
    $region28: #{tpu_custom_call.1} parent=1 // pred_region
      %s827 = ssub.s32 128, 128
      %828 = vsyncadd [#allocation4], %s827
      %s830 = sshll.u32 [#allocation8], 4
      %s831 = int_to_ptr.vmem [resolvable:$true] %s830
      %833 = dma.vmem_to_hbm [thread:$0]  %s831, 128, %s3, [#allocation4]
    $region29: #{tpu_custom_call.1} parent=1 // pred_fallthru
      _
    // Predicated region
    $region30: #{tpu_custom_call.1} parent=1 // pred_check
      _
    $region31: #{tpu_custom_call.1} parent=1 // pred_check_branch
      %835 = sbr.rel (0) target = $region33
    $region32: #{tpu_custom_call.1} parent=1 // pred_region
      %s837 = ssub.s32 128, 128
      %838 = vsyncadd [#allocation10], %s837
      %s840 = sshll.u32 [#allocation9], 4
      %s841 = int_to_ptr.vmem [resolvable:$true] %s840
      %843 = dma.vmem_to_hbm [thread:$0]  %s841, 128, %s4, [#allocation10]
    $region33: #{tpu_custom_call.1} parent=1 // pred_fallthru
      _
    // Predicated region
    $region34: #{tpu_custom_call.1} parent=1 // pred_check
      _
    $region35: #{tpu_custom_call.1} parent=1 // pred_check_branch
      %845 = sbr.rel (0) target = $region37
    $region36: #{tpu_custom_call.1} parent=1 // pred_region
      %846 = dma.done [#allocation4], 128
    $region37: #{tpu_custom_call.1} parent=1 // pred_fallthru
      _
    // Predicated region
    $region38: #{tpu_custom_call.1} parent=1 // pred_check
      _
    $region39: #{tpu_custom_call.1} parent=1 // pred_check_branch
      %848 = sbr.rel (0) target = $region41
    $region40: #{tpu_custom_call.1} parent=1 // pred_region
      %849 = dma.done [#allocation10], 128
    $region41: #{tpu_custom_call.1} parent=1 // pred_fallthru
      _
    %850 = vsyncpa [#allocation3], 1
    %851 = vsyncpa [#allocation6], 1
    %852 = vsyncpa [#allocation4], 1
    %853 = vsyncpa [#allocation10], 1

</llo_original>
